<compile_context>
chip_gen: v7x
topology: tpu7x:2x2x1
jax: 0.10.0
libtpu: 0.0.40
codegen_flags: <defaults>
</compile_context>

<pallas_src>
import functools

import jax
import jax.numpy as jnp
from jax.experimental import pallas as pl
from jax.experimental.pallas import tpu as pltpu

LANE = 128
SUBLANE = 8


def _round_up(n, m):
    return ((n + m - 1) // m) * m


def encoder_kernel(x_ref, w1_ref, b1_ref, w2_ref, b2_ref, wh_ref, bh_ref,
                   out_ref, *, z_dim):
    x = x_ref[...]

    # fc1 + LeakyReLU(0.2)
    h1 = jnp.dot(x, w1_ref[...], preferred_element_type=jnp.float32) + b1_ref[...]
    h1 = jnp.maximum(h1, 0.2 * h1)

    # fc2 + LeakyReLU(0.2)
    h2 = jnp.dot(h1, w2_ref[...], preferred_element_type=jnp.float32) + b2_ref[...]
    h2 = jnp.maximum(h2, 0.2 * h2)

    # Both heads with ONE matmul into a single packed, lane-aligned slab:
    #   cols [0 : z_dim)              -> mu              (= h2 @ Wmu + bmu)
    #   cols [z_dim : z_dim + outz)   -> fc3(mu[:, :hs]) (pre-fused host-side)
    #   cols beyond z_dim + outz      -> exactly zero    (zero-padded weights/bias)
    heads = jnp.dot(h2, wh_ref[...], preferred_element_type=jnp.float32) + bh_ref[...]

    # L2-normalize only the fc3 columns via a lane mask (no unaligned lane slice).
    # Zero pad columns contribute 0 to the sum of squares; mu columns are excluded.
    col = jax.lax.broadcasted_iota(jnp.int32, heads.shape, 1)
    is_y = col >= z_dim
    sumsq = jnp.sum(jnp.where(is_y, heads * heads, 0.0), axis=-1, keepdims=True)
    inv = jax.lax.rsqrt(jnp.maximum(sumsq, 1e-24))   # == 1 / max(||y||, 1e-12)
    out_ref[...] = jnp.where(is_y, heads * inv, heads)


def encoder_forward(x, params, hs_dim, *, batch_tile=512):
    w1, b1, w2, b2, wmu, bmu, w3, b3 = params
    B, res = x.shape
    h1_dim = w1.shape[1]
    hidden = w2.shape[1]
    z_dim = wmu.shape[1]
    outz = w3.shape[1]

    pheads = _round_up(z_dim + outz, LANE)   # packed output slab width (lane-dense)

    # Host-side fc3 pre-fusion: fc3(mu[:, :hs]) = h2 @ (Wmu[:, :hs] @ W3) + (bmu[:, :hs] @ W3 + b3)
    w3f = wmu[:, :hs_dim] @ w3                      # (hidden, outz)
    b3f = bmu[:, :hs_dim] @ w3 + b3                 # (1, outz)
    pad = pheads - (z_dim + outz)
    w_heads = jnp.pad(jnp.concatenate([wmu, w3f], axis=1), ((0, 0), (0, pad)))
    b_heads = jnp.pad(jnp.concatenate([bmu, b3f], axis=1), ((0, 0), (0, pad)))

    # Batch tile: large (amortizes per-step overhead on single-TC v5e/v6e) but
    # capped at ceil(B/2) so the parallel grid has >=2 steps for v7x's 2 TCs.
    tb = min(batch_tile, _round_up(max(-(-B // 2), SUBLANE), SUBLANE))
    tb = min(tb, _round_up(B, SUBLANE))
    grid = (pl.cdiv(B, tb),)

    weight_bytes = 4 * sum(int(a.size) for a in (w1, b1, w2, b2, w_heads, b_heads))
    block_bytes = 4 * tb * (res + pheads + h1_dim + hidden)
    vmem_limit = int(min(64 << 20, max(16 << 20, 4 * (weight_bytes + block_bytes))))

    cost = pl.CostEstimate(
        flops=int(2 * B * (res * h1_dim + h1_dim * hidden + hidden * pheads)),
        transcendentals=int(B),
        bytes_accessed=int(4 * B * res + weight_bytes + 4 * B * pheads),
    )

    batch_map = lambda i: (i, 0)
    const_map = lambda i: (0, 0)   # weights stay resident in VMEM across the grid

    out = pl.pallas_call(
        functools.partial(encoder_kernel, z_dim=z_dim),
        out_shape=jax.ShapeDtypeStruct((B, pheads), jnp.float32),
        grid=grid,
        in_specs=[
            pl.BlockSpec((tb, res), batch_map),
            pl.BlockSpec(w1.shape, const_map),
            pl.BlockSpec(b1.shape, const_map),
            pl.BlockSpec(w2.shape, const_map),
            pl.BlockSpec(b2.shape, const_map),
            pl.BlockSpec(w_heads.shape, const_map),
            pl.BlockSpec(b_heads.shape, const_map),
        ],
        out_specs=pl.BlockSpec((tb, pheads), batch_map),
        compiler_params=pltpu.CompilerParams(
            dimension_semantics=("parallel",),
            vmem_limit_bytes=vmem_limit),
        cost_estimate=cost,
    )(x, w1, b1, w2, b2, w_heads, b_heads)

    # Pure slicing glue (no compute) to match the module's 5-tensor return.
    mu = out[:, :z_dim]
    hs_l2_real = out[:, z_dim:z_dim + outz]
    z = mu
    hs = mu[:, :hs_dim]
    hu = mu[:, hs_dim:]
    return mu, hs, hu, z, hs_l2_real


def init_params(key, res_size, hidden_dim, hs_dim, hu_dim, outz_size):
    """PyTorch nn.Linear-style init: U(-1/sqrt(fan_in), 1/sqrt(fan_in)).
    Weights stored as [in, out] so the kernel computes y = x @ W + b."""
    def linear(k, fan_in, fan_out):
        kw, kb = jax.random.split(k)
        bound = 1.0 / jnp.sqrt(float(fan_in))
        w = jax.random.uniform(kw, (fan_in, fan_out), jnp.float32, -bound, bound)
        b = jax.random.uniform(kb, (1, fan_out), jnp.float32, -bound, bound)
        return w, b

    k1, k2, k3, k4 = jax.random.split(key, 4)
    w1, b1 = linear(k1, res_size, 2 * res_size)          # fc1
    w2, b2 = linear(k2, 2 * res_size, hidden_dim)        # fc2
    wmu, bmu = linear(k3, hidden_dim, hs_dim + hu_dim)   # mu
    w3, b3 = linear(k4, hs_dim, outz_size)               # fc3
    return (w1, b1, w2, b2, wmu, bmu, w3, b3)


if __name__ == "__main__":
    B = 8
    RES_SIZE = 32
    HIDDEN_DIM = 32
    HS_DIM = 16
    HU_DIM = 16
    OUTZ_SIZE = 24

    key = jax.random.PRNGKey(0)
    kx, kp = jax.random.split(key)
    x = jax.random.normal(kx, (B, RES_SIZE), jnp.float32)
    params = init_params(kp, RES_SIZE, HIDDEN_DIM, HS_DIM, HU_DIM, OUTZ_SIZE)

    mu, hs, hu, z, hs_l2_real = encoder_forward(x, params, HS_DIM)
    jax.block_until_ready((mu, hs, hu, z, hs_l2_real))

    # Pure-JAX reference matching the PyTorch forward (unfused summation order).
    w1, b1, w2, b2, wmu, bmu, w3, b3 = params
    h1 = x @ w1 + b1
    h1 = jnp.where(h1 > 0, h1, 0.2 * h1)
    h2 = h1 @ w2 + b2
    h2 = jnp.where(h2 > 0, h2, 0.2 * h2)
    mu_r = h2 @ wmu + bmu
    y_r = mu_r[:, :HS_DIM] @ w3 + b3
    hsn_r = y_r / jnp.maximum(
        jnp.sqrt(jnp.sum(y_r * y_r, axis=-1, keepdims=True)), 1e-12)

    assert mu.shape == (B, HS_DIM + HU_DIM)
    assert hs.shape == (B, HS_DIM) and hu.shape == (B, HU_DIM)
    assert z.shape == (B, HS_DIM + HU_DIM)
    assert hs_l2_real.shape == (B, OUTZ_SIZE)
    assert jnp.allclose(mu, mu_r, atol=1e-5)
    assert jnp.allclose(hs, mu_r[:, :HS_DIM], atol=1e-5)
    assert jnp.allclose(hu, mu_r[:, HS_DIM:], atol=1e-5)
    assert jnp.allclose(z, mu_r, atol=1e-5)
    assert jnp.allclose(hs_l2_real, hsn_r, atol=1e-5)

    print("KERNEL_OK")
</pallas_src>

<mosaic_0001>
module attributes {stable_mosaic.version = 11 : i64} {
  func.func @encoder_kernel(%arg0: i32, %arg1: memref<8x32xf32, #tpu.memory_space<vmem>>, %arg2: memref<32x64xf32, #tpu.memory_space<vmem>>, %arg3: memref<1x64xf32, #tpu.memory_space<vmem>>, %arg4: memref<64x32xf32, #tpu.memory_space<vmem>>, %arg5: memref<1x32xf32, #tpu.memory_space<vmem>>, %arg6: memref<32x128xf32, #tpu.memory_space<vmem>>, %arg7: memref<1x128xf32, #tpu.memory_space<vmem>>, %arg8: memref<8x128xf32, #tpu.memory_space<vmem>>) attributes {dimension_semantics = [#tpu.dimension_semantics<parallel>], iteration_bounds = array<i64: 1>, scalar_prefetch = 0 : i64, scratch_operands = 0 : i64, tpu.core_type = #tpu.core_type<tc>, window_params = [{transform_indices = @transform_0, window_bounds = array<i64: 8, 32>}, {pipeline_mode = #tpu.pipeline_mode<synchronous>, transform_indices = @transform_1, window_bounds = array<i64: 32, 64>}, {pipeline_mode = #tpu.pipeline_mode<synchronous>, transform_indices = @transform_2, window_bounds = array<i64: 1, 64>}, {pipeline_mode = #tpu.pipeline_mode<synchronous>, transform_indices = @transform_3, window_bounds = array<i64: 64, 32>}, {pipeline_mode = #tpu.pipeline_mode<synchronous>, transform_indices = @transform_4, window_bounds = array<i64: 1, 32>}, {pipeline_mode = #tpu.pipeline_mode<synchronous>, transform_indices = @transform_5, window_bounds = array<i64: 32, 128>}, {pipeline_mode = #tpu.pipeline_mode<synchronous>, transform_indices = @transform_6, window_bounds = array<i64: 1, 128>}, {transform_indices = @transform_7, window_bounds = array<i64: 8, 128>}]} {
    %c0 = arith.constant 0 : index
    %c0_0 = arith.constant 0 : index
    %0 = vector.load %arg1[%c0, %c0_0] : memref<8x32xf32, #tpu.memory_space<vmem>>, vector<8x32xf32>
    %c0_1 = arith.constant 0 : index
    %c0_2 = arith.constant 0 : index
    %1 = vector.load %arg2[%c0_1, %c0_2] : memref<32x64xf32, #tpu.memory_space<vmem>>, vector<32x64xf32>
    %cst = arith.constant dense<0.000000e+00> : vector<8x64xf32>
    %2 = tpu.matmul %0, %1, %cst {dimension_numbers = #tpu.dot_dimension_numbers<[1], [0], [0], [1], [0, 0, 1, 1], [], []>} : vector<8x32xf32>, vector<32x64xf32>, vector<8x64xf32> -> vector<8x64xf32>
    %c0_3 = arith.constant 0 : index
    %c0_4 = arith.constant 0 : index
    %3 = vector.load %arg3[%c0_3, %c0_4] : memref<1x64xf32, #tpu.memory_space<vmem>>, vector<1x64xf32>
    %4 = vector.broadcast %3 : vector<1x64xf32> to vector<8x64xf32>
    %5 = arith.addf %2, %4 : vector<8x64xf32>
    %cst_5 = arith.constant 2.000000e-01 : f32
    %6 = vector.broadcast %cst_5 : f32 to vector<8x64xf32>
    %7 = arith.mulf %6, %5 : vector<8x64xf32>
    %8 = arith.maximumf %5, %7 : vector<8x64xf32>
    %c0_6 = arith.constant 0 : index
    %c0_7 = arith.constant 0 : index
    %9 = vector.load %arg4[%c0_6, %c0_7] : memref<64x32xf32, #tpu.memory_space<vmem>>, vector<64x32xf32>
    %cst_8 = arith.constant dense<0.000000e+00> : vector<8x32xf32>
    %10 = tpu.matmul %8, %9, %cst_8 {dimension_numbers = #tpu.dot_dimension_numbers<[1], [0], [0], [1], [0, 0, 1, 1], [], []>} : vector<8x64xf32>, vector<64x32xf32>, vector<8x32xf32> -> vector<8x32xf32>
    %c0_9 = arith.constant 0 : index
    %c0_10 = arith.constant 0 : index
    %11 = vector.load %arg5[%c0_9, %c0_10] : memref<1x32xf32, #tpu.memory_space<vmem>>, vector<1x32xf32>
    %12 = vector.broadcast %11 : vector<1x32xf32> to vector<8x32xf32>
    %13 = arith.addf %10, %12 : vector<8x32xf32>
    %cst_11 = arith.constant 2.000000e-01 : f32
    %14 = vector.broadcast %cst_11 : f32 to vector<8x32xf32>
    %15 = arith.mulf %14, %13 : vector<8x32xf32>
    %16 = arith.maximumf %13, %15 : vector<8x32xf32>
    %c0_12 = arith.constant 0 : index
    %c0_13 = arith.constant 0 : index
    %17 = vector.load %arg6[%c0_12, %c0_13] : memref<32x128xf32, #tpu.memory_space<vmem>>, vector<32x128xf32>
    %cst_14 = arith.constant dense<0.000000e+00> : vector<8x128xf32>
    %18 = tpu.matmul %16, %17, %cst_14 {dimension_numbers = #tpu.dot_dimension_numbers<[1], [0], [0], [1], [0, 0, 1, 1], [], []>} : vector<8x32xf32>, vector<32x128xf32>, vector<8x128xf32> -> vector<8x128xf32>
    %c0_15 = arith.constant 0 : index
    %c0_16 = arith.constant 0 : index
    %19 = vector.load %arg7[%c0_15, %c0_16] : memref<1x128xf32, #tpu.memory_space<vmem>>, vector<1x128xf32>
    %20 = vector.broadcast %19 : vector<1x128xf32> to vector<8x128xf32>
    %21 = arith.addf %18, %20 : vector<8x128xf32>
    %22 = tpu.iota {dimensions = array<i32: 1>} : vector<8x128xi32>
    %c32_i32 = arith.constant 32 : i32
    %23 = vector.broadcast %c32_i32 : i32 to vector<8x128xi32>
    %24 = arith.cmpi sge, %22, %23 : vector<8x128xi32>
    %25 = arith.mulf %21, %21 : vector<8x128xf32>
    %cst_17 = arith.constant 0.000000e+00 : f32
    %26 = vector.broadcast %cst_17 : f32 to vector<8x128xf32>
    %27 = arith.select %24, %25, %26 : vector<8x128xi1>, vector<8x128xf32>
    %cst_18 = arith.constant dense<0.000000e+00> : vector<8xf32>
    %28 = vector.multi_reduction <add>, %27, %cst_18 [1] : vector<8x128xf32> to vector<8xf32>
    %29 = vector.shape_cast %28 : vector<8xf32> to vector<8x1xf32>
    %cst_19 = arith.constant 1.000000e-24 : f32
    %30 = vector.broadcast %cst_19 : f32 to vector<8x1xf32>
    %31 = arith.maximumf %29, %30 : vector<8x1xf32>
    %32 = math.rsqrt %31 : vector<8x1xf32>
    %33 = vector.broadcast %32 : vector<8x1xf32> to vector<8x128xf32>
    %34 = arith.mulf %21, %33 : vector<8x128xf32>
    %35 = arith.select %24, %34, %21 : vector<8x128xi1>, vector<8x128xf32>
    %c0_20 = arith.constant 0 : index
    %c0_21 = arith.constant 0 : index
    %36 = vector.load %arg8[%c0_20, %c0_21] : memref<8x128xf32, #tpu.memory_space<vmem>>, vector<8x128xf32>
    tpu.vector_store %arg8[%c0_20, %c0_21], %35 {strides = array<i32>} : memref<8x128xf32, #tpu.memory_space<vmem>>, vector<8x128xf32>,
    return
  }
  func.func @transform_0(%arg0: i32) -> (i32, i32) {
    %c0_i32 = arith.constant 0 : i32
    %c0_i32_0 = arith.constant 0 : i32
    return %arg0, %c0_i32 : i32, i32
  }
  func.func @transform_1(%arg0: i32) -> (i32, i32) {
    %c0_i32 = arith.constant 0 : i32
    %c0_i32_0 = arith.constant 0 : i32
    %c0_i32_1 = arith.constant 0 : i32
    return %c0_i32, %c0_i32_0 : i32, i32
  }
  func.func @transform_2(%arg0: i32) -> (i32, i32) {
    %c0_i32 = arith.constant 0 : i32
    %c0_i32_0 = arith.constant 0 : i32
    %c0_i32_1 = arith.constant 0 : i32
    return %c0_i32, %c0_i32_0 : i32, i32
  }
  func.func @transform_3(%arg0: i32) -> (i32, i32) {
    %c0_i32 = arith.constant 0 : i32
    %c0_i32_0 = arith.constant 0 : i32
    %c0_i32_1 = arith.constant 0 : i32
    return %c0_i32, %c0_i32_0 : i32, i32
  }
  func.func @transform_4(%arg0: i32) -> (i32, i32) {
    %c0_i32 = arith.constant 0 : i32
    %c0_i32_0 = arith.constant 0 : i32
    %c0_i32_1 = arith.constant 0 : i32
    return %c0_i32, %c0_i32_0 : i32, i32
  }
  func.func @transform_5(%arg0: i32) -> (i32, i32) {
    %c0_i32 = arith.constant 0 : i32
    %c0_i32_0 = arith.constant 0 : i32
    %c0_i32_1 = arith.constant 0 : i32
    return %c0_i32, %c0_i32_0 : i32, i32
  }
  func.func @transform_6(%arg0: i32) -> (i32, i32) {
    %c0_i32 = arith.constant 0 : i32
    %c0_i32_0 = arith.constant 0 : i32
    %c0_i32_1 = arith.constant 0 : i32
    return %c0_i32, %c0_i32_0 : i32, i32
  }
  func.func @transform_7(%arg0: i32) -> (i32, i32) {
    %c0_i32 = arith.constant 0 : i32
    %c0_i32_0 = arith.constant 0 : i32
    return %arg0, %c0_i32 : i32, i32
  }
}

</mosaic_0001>

<llo_original>
// kernel: tpu_custom_call.1
$region0: #{tpu_custom_call.1}
  #allocation0 [shape = 'u32[]', space=smem, size = 0x4, offset = 0x4, fixed_abs, tag = 'smem constant byte address 0x4 - core index']
  #allocation1 [shape = 'u32[144,128]{1,0:T(1,128)}', space=vmem, size = 0x12000, scoped, tag = 'internal scratch']
  %s0 = inlined_call_operand.vmem [shape: f32[8,32], index: 0, kind: input, shape index: {}]
  %s1 = inlined_call_operand.vmem [shape: f32[32,64], index: 1, kind: input, shape index: {}]
  %s2 = inlined_call_operand.vmem [shape: f32[1,64], index: 2, kind: input, shape index: {}]
  %s3 = inlined_call_operand.vmem [shape: f32[64,32], index: 3, kind: input, shape index: {}]
  %s4 = inlined_call_operand.vmem [shape: f32[1,32], index: 4, kind: input, shape index: {}]
  %s5 = inlined_call_operand.vmem [shape: f32[32,128], index: 5, kind: input, shape index: {}]
  %s6 = inlined_call_operand.vmem [shape: f32[1,128], index: 6, kind: input, shape index: {}]
  %s7 = inlined_call_operand.hbm [shape: f32[8,128], index: 7, kind: output, shape index: {}]
  %s8 = sld [smem:[#allocation0]]
  $region38: #{tpu_custom_call.1} parent=0
    _
  %s10 = ssub.s32 1, %s8
  %s11 = scalar_select 0, %s10, %s8
  $region1: #{tpu_custom_call.1} parent=0
    #allocation2 [shape = 'u8[4096]{0}', space=vmem, size = 0x1000, scoped, tag = 'output window, operand 0, single buffered']
    #allocation3 [shape = 's32[1]{0}', space=sflag, size = 0x4, scoped, tag = 'scoped memory for tpu_custom_call.1']
    %12 = vsyncpa [#allocation3], 0
    // Predicated region
    $region2: #{tpu_custom_call.1} parent=1 // pred_check
      _
    $region3: #{tpu_custom_call.1} parent=1 // pred_check_branch
      %14 = sbr.rel (0) target = $region5
    $region4: #{tpu_custom_call.1} parent=1 // pred_region
      _
    $region5: #{tpu_custom_call.1} parent=1 // pred_fallthru
      _
    // Predicated region
    $region6: #{tpu_custom_call.1} parent=1 // pred_check
      _
    $region7: #{tpu_custom_call.1} parent=1 // pred_check_branch
      %16 = sbr.rel (0) target = $region9
    $region8: #{tpu_custom_call.1} parent=1 // pred_region
      _
    $region9: #{tpu_custom_call.1} parent=1 // pred_fallthru
      _
    // Predicated region
    $region10: #{tpu_custom_call.1} parent=1 // pred_check
      _
    $region11: #{tpu_custom_call.1} parent=1 // pred_check_branch
      %18 = sbr.rel (0) target = $region13
    $region12: #{tpu_custom_call.1} parent=1 // pred_region
      _
    $region13: #{tpu_custom_call.1} parent=1 // pred_fallthru
      _
    // Predicated region
    $region14: #{tpu_custom_call.1} parent=1 // pred_check
      _
    $region15: #{tpu_custom_call.1} parent=1 // pred_check_branch
      %20 = sbr.rel (0) target = $region17
    $region16: #{tpu_custom_call.1} parent=1 // pred_region
      _
    $region17: #{tpu_custom_call.1} parent=1 // pred_fallthru
      _
    // Predicated region
    $region18: #{tpu_custom_call.1} parent=1 // pred_check
      _
    $region19: #{tpu_custom_call.1} parent=1 // pred_check_branch
      %22 = sbr.rel (0) target = $region21
    $region20: #{tpu_custom_call.1} parent=1 // pred_region
      _
    $region21: #{tpu_custom_call.1} parent=1 // pred_fallthru
      _
    // Predicated region
    $region22: #{tpu_custom_call.1} parent=1 // pred_check
      _
    $region23: #{tpu_custom_call.1} parent=1 // pred_check_branch
      %24 = sbr.rel (0) target = $region25
    $region24: #{tpu_custom_call.1} parent=1 // pred_region
      _
    $region25: #{tpu_custom_call.1} parent=1 // pred_fallthru
      _
    // Predicated region
    $region26: #{tpu_custom_call.1} parent=1 // pred_check
      _
    $region27: #{tpu_custom_call.1} parent=1 // pred_check_branch
      %26 = sbr.rel (0) target = $region29
    $region28: #{tpu_custom_call.1} parent=1 // pred_region
      _
    $region29: #{tpu_custom_call.1} parent=1 // pred_fallthru
      _
    %v27 = vld [vmem:[%s0] sm:$0xff]
    %v28 = vld [vmem:[%s1] sm:$0xff]
    %v29 = vld [vmem:[%s1 + $0x8] sm:$0xff]
    %v30 = vld [vmem:[%s1 + $0x10] sm:$0xff]
    %v31 = vld [vmem:[%s1 + $0x18] sm:$0xff]
    %v32 = vld [vmem:[%s2] sm:$0x1]
    %v34 = vlaneseq
    %v35 = vshrl.u32 %v34, 7
    %v36 = vsub.s32 0, %v35
    %v37 = vrot.slane %v32, %v36
    %vm39 = vcmask 261120
    %v41 = vsel %vm39, %v27, 0
    %43 = vmatprep.subr.mxu0 0.0
    %44 = vmatpush1.msra.mxu0 %v28
    %45 = vmatprep.subr.mxu0 0.0
    %46 = vmatpush1.msra.mxu0 %v29
    %47 = vmatprep.subr.mxu0 0.0
    %48 = vmatpush1.msra.mxu0 %v30
    %49 = vmatprep.subr.mxu0 0.0
    %50 = vmatpush1.msra.mxu0 %v31
    %51 = vmatprep.subr.mxu0 0.0
    %52 = vmatpush1.msra.mxu0 0.0
    %53 = vmatprep.subr.mxu0 0.0
    %54 = vmatpush1.msra.mxu0 0.0
    %55 = vmatprep.subr.mxu0 0.0
    %56 = vmatpush1.msra.mxu0 0.0
    %57 = vmatprep.subr.mxu0 0.0
    %58 = vmatpush1.msra.mxu0 0.0
    %59 = vmatprep.subr.mxu0 0.0
    %60 = vmatpush1.msra.mxu0 0.0
    %61 = vmatprep.subr.mxu0 0.0
    %62 = vmatpush1.msra.mxu0 0.0
    %63 = vmatprep.subr.mxu0 0.0
    %64 = vmatpush1.msra.mxu0 0.0
    %65 = vmatprep.subr.mxu0 0.0
    %66 = vmatpush1.msra.mxu0 0.0
    %67 = vmatprep.subr.mxu0 0.0
    %68 = vmatpush1.msra.mxu0 0.0
    %69 = vmatprep.subr.mxu0 0.0
    %70 = vmatpush1.msra.mxu0 0.0
    %71 = vmatprep.subr.mxu0 0.0
    %72 = vmatpush1.msra.mxu0 0.0
    %73 = vmatprep.subr.mxu0 0.0
    %74 = vmatpush1.msra.mxu0 0.0
    %75 = vmatprep.subr.mxu0 0.0
    %76 = vmatpush1.msra.mxu0 0.0
    %77 = vmatprep.subr.mxu0 0.0
    %78 = vmatpush1.msra.mxu0 0.0
    %79 = vmatprep.subr.mxu0 0.0
    %80 = vmatpush1.msra.mxu0 0.0
    %81 = vmatprep.subr.mxu0 0.0
    %82 = vmatpush1.msra.mxu0 0.0
    %83 = vmatprep.subr.mxu0 0.0
    %84 = vmatpush1.msra.mxu0 0.0
    %85 = vmatprep.subr.mxu0 0.0
    %86 = vmatpush1.msra.mxu0 0.0
    %87 = vmatprep.subr.mxu0 0.0
    %88 = vmatpush1.msra.mxu0 0.0
    %89 = vmatprep.subr.mxu0 0.0
    %90 = vmatpush1.msra.mxu0 0.0
    %91 = vmatprep.subr.mxu0 0.0
    %92 = vmatpush1.msra.mxu0 0.0
    %93 = vmatprep.subr.mxu0 0.0
    %94 = vmatpush1.msra.mxu0 0.0
    %95 = vmatprep.subr.mxu0 0.0
    %96 = vmatpush1.msra.mxu0 0.0
    %97 = vmatprep.subr.mxu0 0.0
    %98 = vmatpush1.msra.mxu0 0.0
    %99 = vmatprep.subr.mxu0 0.0
    %100 = vmatpush1.msra.mxu0 0.0
    %101 = vmatprep.subr.mxu0 0.0
    %102 = vmatpush1.msra.mxu0 0.0
    %103 = vmatprep.subr.mxu0 0.0
    %104 = vmatpush1.msra.mxu0 0.0
    %105 = vmatprep.subr.mxu0 0.0
    %106 = vmatpush1.msra.mxu0 0.0
    %107 = vmatprep.mubr.f32.mxu0 0.0
    %108 = vmatmul.mubr.f32.gmra.mrb[0].mxu0 %v41
    %v109 = vpop.f32.mrb[0].mxu0
    %v110 = vadd.f32 %v37, %v109
    %v111 = vpop.f32.mrb[0].mxu0
    %112 = vdwg.mxu0
    %v113 = vmul.f32 %v110, 0.2
    %v114 = vmax.f32 %v110, %v113
    %v115 = vld [vmem:[%s3] sm:$0xff]
    %v116 = vld [vmem:[%s3 + $0x8] sm:$0xff]
    %v117 = vld [vmem:[%s3 + $0x10] sm:$0xff]
    %v118 = vld [vmem:[%s3 + $0x18] sm:$0xff]
    %v119 = vld [vmem:[%s3 + $0x20] sm:$0xff]
    %v120 = vld [vmem:[%s3 + $0x28] sm:$0xff]
    %v121 = vld [vmem:[%s3 + $0x30] sm:$0xff]
    %v122 = vld [vmem:[%s3 + $0x38] sm:$0xff]
    %v123 = vld [vmem:[%s4] sm:$0x1]
    %v125 = vlaneseq
    %v126 = vshrl.u32 %v125, 7
    %v127 = vsub.s32 0, %v126
    %v128 = vrot.slane %v123, %v127
    %vm130 = vcmask 523264
    %v132 = vsel %vm130, %v114, 0
    %134 = vmatprep.subr.mxu0 0.0
    %135 = vmatpush1.msra.mxu0 %v115
    %136 = vmatprep.subr.mxu0 0.0
    %137 = vmatpush1.msra.mxu0 %v116
    %138 = vmatprep.subr.mxu0 0.0
    %139 = vmatpush1.msra.mxu0 %v117
    %140 = vmatprep.subr.mxu0 0.0
    %141 = vmatpush1.msra.mxu0 %v118
    %142 = vmatprep.subr.mxu0 0.0
    %143 = vmatpush1.msra.mxu0 %v119
    %144 = vmatprep.subr.mxu0 0.0
    %145 = vmatpush1.msra.mxu0 %v120
    %146 = vmatprep.subr.mxu0 0.0
    %147 = vmatpush1.msra.mxu0 %v121
    %148 = vmatprep.subr.mxu0 0.0
    %149 = vmatpush1.msra.mxu0 %v122
    %150 = vmatprep.subr.mxu0 0.0
    %151 = vmatpush1.msra.mxu0 0.0
    %152 = vmatprep.subr.mxu0 0.0
    %153 = vmatpush1.msra.mxu0 0.0
    %154 = vmatprep.subr.mxu0 0.0
    %155 = vmatpush1.msra.mxu0 0.0
    %156 = vmatprep.subr.mxu0 0.0
    %157 = vmatpush1.msra.mxu0 0.0
    %158 = vmatprep.subr.mxu0 0.0
    %159 = vmatpush1.msra.mxu0 0.0
    %160 = vmatprep.subr.mxu0 0.0
    %161 = vmatpush1.msra.mxu0 0.0
    %162 = vmatprep.subr.mxu0 0.0
    %163 = vmatpush1.msra.mxu0 0.0
    %164 = vmatprep.subr.mxu0 0.0
    %165 = vmatpush1.msra.mxu0 0.0
    %166 = vmatprep.subr.mxu0 0.0
    %167 = vmatpush1.msra.mxu0 0.0
    %168 = vmatprep.subr.mxu0 0.0
    %169 = vmatpush1.msra.mxu0 0.0
    %170 = vmatprep.subr.mxu0 0.0
    %171 = vmatpush1.msra.mxu0 0.0
    %172 = vmatprep.subr.mxu0 0.0
    %173 = vmatpush1.msra.mxu0 0.0
    %174 = vmatprep.subr.mxu0 0.0
    %175 = vmatpush1.msra.mxu0 0.0
    %176 = vmatprep.subr.mxu0 0.0
    %177 = vmatpush1.msra.mxu0 0.0
    %178 = vmatprep.subr.mxu0 0.0
    %179 = vmatpush1.msra.mxu0 0.0
    %180 = vmatprep.subr.mxu0 0.0
    %181 = vmatpush1.msra.mxu0 0.0
    %182 = vmatprep.subr.mxu0 0.0
    %183 = vmatpush1.msra.mxu0 0.0
    %184 = vmatprep.subr.mxu0 0.0
    %185 = vmatpush1.msra.mxu0 0.0
    %186 = vmatprep.subr.mxu0 0.0
    %187 = vmatpush1.msra.mxu0 0.0
    %188 = vmatprep.subr.mxu0 0.0
    %189 = vmatpush1.msra.mxu0 0.0
    %190 = vmatprep.subr.mxu0 0.0
    %191 = vmatpush1.msra.mxu0 0.0
    %192 = vmatprep.subr.mxu0 0.0
    %193 = vmatpush1.msra.mxu0 0.0
    %194 = vmatprep.subr.mxu0 0.0
    %195 = vmatpush1.msra.mxu0 0.0
    %196 = vmatprep.subr.mxu0 0.0
    %197 = vmatpush1.msra.mxu0 0.0
    %198 = vmatprep.mubr.f32.mxu0 0.0
    %199 = vmatmul.mubr.f32.gmra.mrb[0].mxu0 %v132
    %v200 = vpop.f32.mrb[0].mxu0
    %v201 = vadd.f32 %v128, %v200
    %v202 = vpop.f32.mrb[0].mxu0
    %203 = vdwg.mxu0
    %v204 = vmul.f32 %v201, 0.2
    %v205 = vmax.f32 %v201, %v204
    %v206 = vld [vmem:[%s5] sm:$0xff]
    %v207 = vld [vmem:[%s5 + $0x8] sm:$0xff]
    %v208 = vld [vmem:[%s5 + $0x10] sm:$0xff]
    %v209 = vld [vmem:[%s5 + $0x18] sm:$0xff]
    %v210 = vld [vmem:[%s6] sm:$0x1]
    %v212 = vlaneseq
    %v213 = vshrl.u32 %v212, 7
    %v214 = vsub.s32 0, %v213
    %v215 = vrot.slane %v210, %v214
    %v218 = vsel %vm39, %v205, 0
    %220 = vmatprep.subr.mxu0 0.0
    %221 = vmatpush1.msra.mxu0 %v206
    %222 = vmatprep.subr.mxu0 0.0
    %223 = vmatpush1.msra.mxu0 %v207
    %224 = vmatprep.subr.mxu0 0.0
    %225 = vmatpush1.msra.mxu0 %v208
    %226 = vmatprep.subr.mxu0 0.0
    %227 = vmatpush1.msra.mxu0 %v209
    %228 = vmatprep.subr.mxu0 0.0
    %229 = vmatpush1.msra.mxu0 0.0
    %230 = vmatprep.subr.mxu0 0.0
    %231 = vmatpush1.msra.mxu0 0.0
    %232 = vmatprep.subr.mxu0 0.0
    %233 = vmatpush1.msra.mxu0 0.0
    %234 = vmatprep.subr.mxu0 0.0
    %235 = vmatpush1.msra.mxu0 0.0
    %236 = vmatprep.subr.mxu0 0.0
    %237 = vmatpush1.msra.mxu0 0.0
    %238 = vmatprep.subr.mxu0 0.0
    %239 = vmatpush1.msra.mxu0 0.0
    %240 = vmatprep.subr.mxu0 0.0
    %241 = vmatpush1.msra.mxu0 0.0
    %242 = vmatprep.subr.mxu0 0.0
    %243 = vmatpush1.msra.mxu0 0.0
    %244 = vmatprep.subr.mxu0 0.0
    %245 = vmatpush1.msra.mxu0 0.0
    %246 = vmatprep.subr.mxu0 0.0
    %247 = vmatpush1.msra.mxu0 0.0
    %248 = vmatprep.subr.mxu0 0.0
    %249 = vmatpush1.msra.mxu0 0.0
    %250 = vmatprep.subr.mxu0 0.0
    %251 = vmatpush1.msra.mxu0 0.0
    %252 = vmatprep.subr.mxu0 0.0
    %253 = vmatpush1.msra.mxu0 0.0
    %254 = vmatprep.subr.mxu0 0.0
    %255 = vmatpush1.msra.mxu0 0.0
    %256 = vmatprep.subr.mxu0 0.0
    %257 = vmatpush1.msra.mxu0 0.0
    %258 = vmatprep.subr.mxu0 0.0
    %259 = vmatpush1.msra.mxu0 0.0
    %260 = vmatprep.subr.mxu0 0.0
    %261 = vmatpush1.msra.mxu0 0.0
    %262 = vmatprep.subr.mxu0 0.0
    %263 = vmatpush1.msra.mxu0 0.0
    %264 = vmatprep.subr.mxu0 0.0
    %265 = vmatpush1.msra.mxu0 0.0
    %266 = vmatprep.subr.mxu0 0.0
    %267 = vmatpush1.msra.mxu0 0.0
    %268 = vmatprep.subr.mxu0 0.0
    %269 = vmatpush1.msra.mxu0 0.0
    %270 = vmatprep.subr.mxu0 0.0
    %271 = vmatpush1.msra.mxu0 0.0
    %272 = vmatprep.subr.mxu0 0.0
    %273 = vmatpush1.msra.mxu0 0.0
    %274 = vmatprep.subr.mxu0 0.0
    %275 = vmatpush1.msra.mxu0 0.0
    %276 = vmatprep.subr.mxu0 0.0
    %277 = vmatpush1.msra.mxu0 0.0
    %278 = vmatprep.subr.mxu0 0.0
    %279 = vmatpush1.msra.mxu0 0.0
    %280 = vmatprep.subr.mxu0 0.0
    %281 = vmatpush1.msra.mxu0 0.0
    %282 = vmatprep.subr.mxu0 0.0
    %283 = vmatpush1.msra.mxu0 0.0
    %284 = vmatprep.mubr.f32.mxu0 0.0
    %285 = vmatmul.mubr.f32.gmra.mrb[0].mxu0 %v218
    %v286 = vpop.f32.mrb[0].mxu0
    %v287 = vadd.f32 %v215, %v286
    %v288 = vpop.f32.mrb[0].mxu0
    %289 = vdwg.mxu0
    %v290 = vlaneseq
    %v291 = vand.u32 %v290, 127
    %vm292 = vcmp.ge.s32.totalorder %v291, 32
    %v293 = vmul.f32 %v287, %v287
    %v294 = vsel %vm292, %v293, 0.0
    %295 = vadd.xlane.f32.xlu0 %v294
    %v296 = vpop.xlane.xlu0 %295
    %v297 = vmax.f32 %v296, 1e-24
    %v298 = vrsqrt.pop %v297
    %v299 = vmul.f32 %v287, %v298
    %v300 = vsel %vm292, %v299, %v287
    %301 = vst [vmem:[#allocation2] sm:$0xff] %v300
    // Predicated region
    $region30: #{tpu_custom_call.1} parent=1 // pred_check
      _
    $region31: #{tpu_custom_call.1} parent=1 // pred_check_branch
      %303 = sbr.rel (0) target = $region33
    $region32: #{tpu_custom_call.1} parent=1 // pred_region
      %s305 = ssub.s32 128, 128
      %306 = vsyncadd [#allocation3], %s305
      %s308 = sshll.u32 [#allocation2], 4
      %s309 = int_to_ptr.vmem [resolvable:$true] %s308
      %311 = dma.vmem_to_hbm [thread:$0]  %s309, 128, %s7, [#allocation3]
    $region33: #{tpu_custom_call.1} parent=1 // pred_fallthru
      _
    // Predicated region
    $region34: #{tpu_custom_call.1} parent=1 // pred_check
      _
    $region35: #{tpu_custom_call.1} parent=1 // pred_check_branch
      %313 = sbr.rel (0) target = $region37
    $region36: #{tpu_custom_call.1} parent=1 // pred_region
      %314 = dma.done [#allocation3], 128
    $region37: #{tpu_custom_call.1} parent=1 // pred_fallthru
      _
    %315 = vsyncpa [#allocation3], 1

</llo_original>
